<compile_context>
chip_gen: v7x
topology: tpu7x:2x2x1
jax: 0.10.0
libtpu: 0.0.40
codegen_flags: <defaults>
</compile_context>

<pallas_src>
import jax
import jax.numpy as jnp
from jax.experimental import pallas as pl
from jax.experimental.pallas import tpu as pltpu


def _round_up(n, m):
    return ((n + m - 1) // m) * m


def prepare_prototypes(prototypes, logit_scale):
    """One-time prototype prep (hoist out of the per-call path: prototypes and
    logit_scale are static module state).

    L2-normalizes each prototype row, folds in exp(logit_scale), transposes to
    [D, C] so the kernel contraction is a plain NN matmul with the 128-aligned
    class dim on the MXU lane axis, and casts to bf16.
    """
    p32 = prototypes.astype(jnp.float32)
    # eps: an all-zero prototype row yields zero logits instead of NaN.
    p32 = p32 * jax.lax.rsqrt(jnp.sum(p32 * p32, axis=-1, keepdims=True) + 1e-12)
    p32 = p32 * jnp.exp(jnp.asarray(logit_scale, jnp.float32))
    return jnp.transpose(p32).astype(jnp.bfloat16)            # [D, C]


def _make_kernel(cache_x_across_classes, class_axis):
    """Kernel factory.

    x_ref: (tile_n, D) caller dtype; p_ref: (D, tile_c) bf16 (pre-normalized,
    pre-scaled, pre-transposed); o_ref: (tile_n, tile_c); xs_ref (only when
    caching): (tile_n, D) bf16 scratch with the normalized feature tile.
    """

    def normalized(x_ref):
        x = x_ref[...].astype(jnp.float32)
        # Row-wise L2 normalization in f32 (rsqrt -> EUP slot).  eps keeps
        # all-zero (or OOB-garbage) rows finite; exp(logit_scale) is already
        # folded into the prototypes.
        inv = jax.lax.rsqrt(jnp.sum(x * x, axis=-1, keepdims=True) + 1e-12)
        return (x * inv).astype(jnp.bfloat16)

    def matmul(x_scaled, p_ref, o_ref):
        # Plain NN contraction -> MXU, bf16 operands, f32 accumulation.
        o_ref[...] = jax.lax.dot_general(
            x_scaled, p_ref[...],
            dimension_numbers=(((1,), (0,)), ((), ())),
            preferred_element_type=jnp.float32,
        ).astype(o_ref.dtype)

    if cache_x_across_classes:
        def kernel(x_ref, p_ref, o_ref, xs_ref):
            # Feature tile is revisited across class tiles (class axis is the
            # inner sequential axis): normalize it only once per row tile.
            @pl.when(pl.program_id(class_axis) == 0)
            def _():
                xs_ref[...] = normalized(x_ref)
            matmul(xs_ref[...], p_ref, o_ref)
    else:
        def kernel(x_ref, p_ref, o_ref):
            matmul(normalized(x_ref), p_ref, o_ref)

    return kernel


def linear_probe_logits(features, prototypes_t, *, tile_n=256, tile_c=None,
                        out_dtype=jnp.float32,
                        vmem_budget_bytes=40 * 1024 * 1024):
    """logits = L2-normalize(features) @ prototypes_t, where prototypes_t comes
    from prepare_prototypes() ([D, C] bf16, already normalized * exp(scale))."""
    N, D = features.shape
    D2, C = prototypes_t.shape
    assert D == D2, "feature / prototype dim mismatch"
    feat_bytes = jnp.dtype(features.dtype).itemsize
    out_bytes = jnp.dtype(out_dtype).itemsize

    # --- row tiling: big tiles, clamped for tiny batches.  No feature padding:
    # Pallas clips the ragged last row tile; out_shape has exactly N rows so
    # garbage rows are never stored (row-wise kernel -> no leakage into rows<N).
    tile_n = max(8, min(_round_up(tile_n, 8), _round_up(N, 8)))
    grid_n = pl.cdiv(N, tile_n)

    # --- class tiling: largest lane-dense tile fitting a v7x-safe VMEM budget;
    # 256-granular when forced to tile (v6e/v7x MXU is 2x256x256).
    c_base = _round_up(C, 128)
    cap = c_base if tile_c is None else min(_round_up(tile_c, 128), c_base)
    fixed = 2 * tile_n * D * feat_bytes + tile_n * D * 2            # x bufs + scratch
    per_c = 2 * D * 2 + 2 * tile_n * out_bytes                      # p bufs + out bufs
    fit = max((vmem_budget_bytes - fixed) // per_c, 128)
    tile_c = min(cap, int(fit))
    if tile_c < cap:
        gran = 256 if tile_c >= 256 else 128
        tile_c = max((tile_c // gran) * gran, 128)
    # Single row tile: split the class axis so both v7x TensorCores get grid
    # steps (harmless elsewhere: one extra ~0.35us grid step).
    if grid_n == 1 and tile_c >= c_base and c_base >= 512:
        tile_c = _round_up(c_base // 2, 128)
    c_pad = _round_up(C, tile_c)
    grid_c = c_pad // tile_c

    # Class-dim pad only touches the small, static prototype matrix (zero
    # columns -> zero logits, sliced off below); output stays lane-dense.
    p_padded = prototypes_t if c_pad == C else jnp.pad(
        prototypes_t, ((0, 0), (0, c_pad - C)))

    # --- grid-axis order: minimize re-streamed HBM bytes.  Pallas elides the
    # DMA when a block index repeats, so the operand revisited along the inner
    # axis is only re-fetched when its block index actually changes.
    fetch_x_a, fetch_p_a = grid_n, (grid_n * grid_c if grid_c > 1 else 1)
    fetch_x_b, fetch_p_b = (grid_n * grid_c if grid_n > 1 else 1), grid_c
    bytes_a = fetch_x_a * tile_n * D * feat_bytes + fetch_p_a * tile_c * D * 2
    bytes_b = fetch_x_b * tile_n * D * feat_bytes + fetch_p_b * tile_c * D * 2
    class_inner = bytes_a <= bytes_b            # order A: grid = (rows, classes)

    cache_x = class_inner and grid_n > 1 and grid_c > 1
    single_proto_buf = class_inner and grid_c == 1 and grid_n > 1

    if class_inner:
        grid = (grid_n, grid_c)
        x_map = lambda i, j: (i, 0)
        p_map = lambda i, j: (0, j)
        o_map = lambda i, j: (i, j)
        class_axis = 1
        # The cached normalized-feature tile carries state across the class
        # axis -> that axis must stay sequential on a core ("arbitrary");
        # rows stay "parallel" for megacore sharding.
        sem = ("parallel", "arbitrary" if cache_x else "parallel")
    else:
        grid = (grid_c, grid_n)
        x_map = lambda j, i: (i, 0)
        p_map = lambda j, i: (0, j)
        o_map = lambda j, i: (i, j)
        class_axis = 0
        sem = ("parallel", "parallel")

    scratch = [pltpu.VMEM((tile_n, D), jnp.bfloat16)] if cache_x else []

    # Explicit VMEM limit (old TODO resolved): cover the estimated tile
    # footprint with headroom, never above v7x's 64 MiB physical VMEM.
    proto_bufs = 1 if single_proto_buf else 2
    est = (2 * tile_n * D * feat_bytes + proto_bufs * D * tile_c * 2
           + 2 * tile_n * tile_c * out_bytes + tile_n * D * 2)
    vmem_limit = int(min(64 << 20, max(32 << 20, est + (4 << 20))))

    kernel = _make_kernel(cache_x, class_axis)

    def build(use_single_proto_buf):
        p_kwargs = {}
        if use_single_proto_buf:
            # Grid-invariant prototype block: one VMEM buffer is enough; the
            # default double-buffering would waste half its footprint (matters
            # most on v7x's 64 MiB VMEM).
            p_kwargs["pipeline_mode"] = pl.Buffered(1)
        return pl.pallas_call(
            kernel,
            out_shape=jax.ShapeDtypeStruct((N, c_pad), out_dtype),
            grid_spec=pltpu.PrefetchScalarGridSpec(
                num_scalar_prefetch=0,
                grid=grid,
                in_specs=[
                    pl.BlockSpec((tile_n, D), x_map),               # feature tile
                    pl.BlockSpec((D, tile_c), p_map, **p_kwargs),   # prototypes
                ],
                out_specs=pl.BlockSpec((tile_n, tile_c), o_map),
                scratch_shapes=scratch,
            ),
            compiler_params=pltpu.CompilerParams(
                dimension_semantics=sem,
                vmem_limit_bytes=vmem_limit,
            ),
        )

    try:
        out = build(single_proto_buf)(features, p_padded)
    except Exception:
        if not single_proto_buf:
            raise
        # Fallback if this Pallas build rejects buffer_count=1.
        out = build(False)(features, p_padded)

    return out if c_pad == C else out[:, :C]


def linear_probe_head_forward(features, prototypes, logit_scale, **kwargs):
    """LinearProbeHead.forward.  Callers with static prototypes should call
    prepare_prototypes() once and linear_probe_logits() per batch; this
    convenience wrapper redoes the (cheap but non-free) prep every call."""
    return linear_probe_logits(
        features, prepare_prototypes(prototypes, logit_scale), **kwargs)


if __name__ == "__main__":
    key = jax.random.PRNGKey(0)
    k_feat, k_proto = jax.random.split(key)

    # Small shapes consistent with the module: N CLIP image features of dim D,
    # C class prototypes (zero-shot text embeddings), CLIP-style logit_scale.
    N, D, C = 16, 64, 8

    x = jax.random.normal(k_feat, (N, D), dtype=jnp.float32)
    prototypes = jax.random.normal(k_proto, (C, D), dtype=jnp.float32)
    logit_scale = jnp.log(jnp.float32(1.0 / 0.07))   # CLIP default

    out = linear_probe_head_forward(x, prototypes, logit_scale)
    out = jax.block_until_ready(out)

    # Reference in plain f32 JAX (same math as the PyTorch module).
    x_n = x / jnp.linalg.norm(x, axis=-1, keepdims=True)
    p_n = prototypes / jnp.linalg.norm(prototypes, axis=-1, keepdims=True)
    ref = x_n @ p_n.T * jnp.exp(logit_scale)

    assert out.shape == (N, C)
    # bf16 MXU operands -> tolerance loosened vs. the pure-f32 reference
    # (~1e-2 level error is expected and fine for argmax classification).
    assert jnp.allclose(out, ref, atol=1e-1, rtol=1e-1), \
        float(jnp.max(jnp.abs(out - ref)))

    print("KERNEL_OK")
</pallas_src>

<mosaic_0001>
module attributes {stable_mosaic.version = 11 : i64} {
  func.func @kernel(%arg0: i32, %arg1: i32, %arg2: memref<16x64xf32, #tpu.memory_space<vmem>>, %arg3: memref<64x128xbf16, #tpu.memory_space<vmem>>, %arg4: memref<16x128xf32, #tpu.memory_space<vmem>>) attributes {dimension_semantics = [#tpu.dimension_semantics<parallel>, #tpu.dimension_semantics<parallel>], iteration_bounds = array<i64: 1, 1>, scalar_prefetch = 0 : i64, scratch_operands = 0 : i64, tpu.core_type = #tpu.core_type<tc>, window_params = [{transform_indices = @transform_0, window_bounds = array<i64: 16, 64>}, {transform_indices = @transform_1, window_bounds = array<i64: 64, 128>}, {transform_indices = @transform_2, window_bounds = array<i64: 16, 128>}]} {
    %c0 = arith.constant 0 : index
    %c0_0 = arith.constant 0 : index
    %0 = vector.load %arg2[%c0, %c0_0] : memref<16x64xf32, #tpu.memory_space<vmem>>, vector<16x64xf32>
    %1 = arith.mulf %0, %0 : vector<16x64xf32>
    %cst = arith.constant dense<0.000000e+00> : vector<16xf32>
    %2 = vector.multi_reduction <add>, %1, %cst [1] : vector<16x64xf32> to vector<16xf32>
    %3 = vector.shape_cast %2 : vector<16xf32> to vector<16x1xf32>
    %cst_1 = arith.constant 9.99999996E-13 : f32
    %4 = vector.broadcast %cst_1 : f32 to vector<16x1xf32>
    %5 = arith.addf %3, %4 : vector<16x1xf32>
    %6 = math.rsqrt %5 : vector<16x1xf32>
    %7 = vector.broadcast %6 : vector<16x1xf32> to vector<16x64xf32>
    %8 = arith.mulf %0, %7 : vector<16x64xf32>
    %9 = arith.truncf %8 : vector<16x64xf32> to vector<16x64xbf16>
    %c0_2 = arith.constant 0 : index
    %c0_3 = arith.constant 0 : index
    %10 = vector.load %arg3[%c0_2, %c0_3] : memref<64x128xbf16, #tpu.memory_space<vmem>>, vector<64x128xbf16>
    %cst_4 = arith.constant dense<0.000000e+00> : vector<16x128xf32>
    %11 = tpu.matmul %9, %10, %cst_4 {dimension_numbers = #tpu.dot_dimension_numbers<[1], [0], [0], [1], [0, 0, 1, 1], [], []>} : vector<16x64xbf16>, vector<64x128xbf16>, vector<16x128xf32> -> vector<16x128xf32>
    %c0_5 = arith.constant 0 : index
    %c0_6 = arith.constant 0 : index
    %12 = vector.load %arg4[%c0_5, %c0_6] : memref<16x128xf32, #tpu.memory_space<vmem>>, vector<16x128xf32>
    tpu.vector_store %arg4[%c0_5, %c0_6], %11 {strides = array<i32>} : memref<16x128xf32, #tpu.memory_space<vmem>>, vector<16x128xf32>,
    return
  }
  func.func @transform_0(%arg0: i32, %arg1: i32) -> (i32, i32) {
    %c0_i32 = arith.constant 0 : i32
    %c0_i32_0 = arith.constant 0 : i32
    return %arg0, %c0_i32 : i32, i32
  }
  func.func @transform_1(%arg0: i32, %arg1: i32) -> (i32, i32) {
    %c0_i32 = arith.constant 0 : i32
    %c0_i32_0 = arith.constant 0 : i32
    return %c0_i32, %arg1 : i32, i32
  }
  func.func @transform_2(%arg0: i32, %arg1: i32) -> (i32, i32) {
    %c0_i32 = arith.constant 0 : i32
    return %arg0, %arg1 : i32, i32
  }
}

</mosaic_0001>

<llo_original>
// kernel: tpu_custom_call.1
$region0: #{tpu_custom_call.1}
  #allocation0 [shape = 'u32[]', space=smem, size = 0x4, offset = 0x4, fixed_abs, tag = 'smem constant byte address 0x4 - core index']
  #allocation1 [shape = 'u32[144,128]{1,0:T(1,128)}', space=vmem, size = 0x12000, scoped, tag = 'internal scratch']
  %s0 = inlined_call_operand.hbm [shape: f32[16,64], index: 0, kind: input, shape index: {}]
  %s1 = inlined_call_operand.hbm [shape: bf16[64,128], index: 1, kind: input, shape index: {}]
  %s2 = inlined_call_operand.hbm [shape: f32[16,128], index: 2, kind: output, shape index: {}]
  %s3 = sld [smem:[#allocation0]]
  $region26: #{tpu_custom_call.1} parent=0
    _
  %s5 = ssub.s32 1, %s3
  %s6 = scalar_select 0, %s5, %s3
  $region1: #{tpu_custom_call.1} parent=0
    #allocation2 [shape = 'u8[8192]{0}', space=vmem, size = 0x2000, scoped, tag = 'input window, operand 0, single buffered']
    #allocation3 [shape = 's32[1]{0}', space=sflag, size = 0x4, scoped, tag = 'scoped memory for tpu_custom_call.1']
    #allocation4 [shape = 's32[1]{0}', space=sflag, size = 0x4, scoped, tag = 'scoped memory for tpu_custom_call.1']
    #allocation5 [shape = 'u8[16384]{0}', space=vmem, size = 0x4000, scoped, tag = 'input window, operand 1, single buffered']
    #allocation6 [shape = 's32[1]{0}', space=sflag, size = 0x4, scoped, tag = 'scoped memory for tpu_custom_call.1']
    #allocation7 [shape = 'u8[8192]{0}', space=vmem, size = 0x2000, scoped, tag = 'output window, operand 0, single buffered']
    %7 = vsyncpa [#allocation3], 0
    %8 = vsyncpa [#allocation6], 0
    %9 = vsyncpa [#allocation4], 0
    // Predicated region
    $region2: #{tpu_custom_call.1} parent=1 // pred_check
      _
    $region3: #{tpu_custom_call.1} parent=1 // pred_check_branch
      %11 = sbr.rel (0) target = $region5
    $region4: #{tpu_custom_call.1} parent=1 // pred_region
      %s13 = ssub.s32 256, 256
      %14 = vsyncadd [#allocation3], %s13
      %s15 = sshll.u32 [#allocation2], 4
      %s16 = int_to_ptr.vmem [resolvable:$true] %s15
      %21 = dma.hbm_to_vmem [thread:$0]  %s0, 256, %s16, [#allocation3], 128, 128, 8
    $region5: #{tpu_custom_call.1} parent=1 // pred_fallthru
      _
    // Predicated region
    $region6: #{tpu_custom_call.1} parent=1 // pred_check
      _
    $region7: #{tpu_custom_call.1} parent=1 // pred_check_branch
      %23 = sbr.rel (0) target = $region9
    $region8: #{tpu_custom_call.1} parent=1 // pred_region
      %s25 = ssub.s32 512, 512
      %26 = vsyncadd [#allocation6], %s25
      %s27 = sshll.u32 [#allocation5], 4
      %s28 = int_to_ptr.vmem [resolvable:$true] %s27
      %33 = dma.hbm_to_vmem [thread:$0]  %s1, 512, %s28, [#allocation6], 64, 64, 4
    $region9: #{tpu_custom_call.1} parent=1 // pred_fallthru
      _
    // Predicated region
    $region10: #{tpu_custom_call.1} parent=1 // pred_check
      _
    $region11: #{tpu_custom_call.1} parent=1 // pred_check_branch
      %35 = sbr.rel (0) target = $region13
    $region12: #{tpu_custom_call.1} parent=1 // pred_region
      %36 = dma.done [#allocation3], 256
    $region13: #{tpu_custom_call.1} parent=1 // pred_fallthru
      _
    // Predicated region
    $region14: #{tpu_custom_call.1} parent=1 // pred_check
      _
    $region15: #{tpu_custom_call.1} parent=1 // pred_check_branch
      %38 = sbr.rel (0) target = $region17
    $region16: #{tpu_custom_call.1} parent=1 // pred_region
      %39 = dma.done [#allocation6], 512
    $region17: #{tpu_custom_call.1} parent=1 // pred_fallthru
      _
    %v41 = vld [vmem:[#allocation2] sm:$0xff]
    %v42 = vld [vmem:[#allocation2 + $0x8] sm:$0xff]
    %v43 = vmul.f32 %v41, %v41
    %v44 = vmul.f32 %v42, %v42
    %vm45 = vcmask 523264
    %v46 = vsel %vm45, %v43, 0.0
    %47 = vadd.xlane.f32.xlu0 %v46
    %v48 = vpop.xlane.xlu0 %47
    %v49 = vsel %vm45, %v44, 0.0
    %50 = vadd.xlane.f32.xlu0 %v49
    %v51 = vpop.xlane.xlu0 %50
    %v52 = vadd.f32 %v48, 1e-12
    %v53 = vadd.f32 %v51, 1e-12
    %v54 = vrsqrt.pop %v52
    %v55 = vrsqrt.pop %v53
    %v56 = vmul.f32 %v41, %v54
    %v57 = vmul.f32 %v42, %v55
    %v58 = vpack.c.bf16 %v57, %v56
    %v59 = vld [vmem:[#allocation5] sm:$0xf]
    %v60 = vld [vmem:[#allocation5 + $0x4] sm:$0xf]
    %v61 = vld [vmem:[#allocation5 + $0x8] sm:$0xf]
    %v62 = vld [vmem:[#allocation5 + $0xc] sm:$0xf]
    %v63 = vld [vmem:[#allocation5 + $0x10] sm:$0xf]
    %v64 = vld [vmem:[#allocation5 + $0x14] sm:$0xf]
    %v65 = vld [vmem:[#allocation5 + $0x18] sm:$0xf]
    %v66 = vld [vmem:[#allocation5 + $0x1c] sm:$0xf]
    %v75 = vunpack.c.l.b16 %v59
    %v76 = vunpack.c.l.b16 %v60
    %v77 = vunpack.c.l.b16 %v61
    %v78 = vunpack.c.l.b16 %v62
    %v79 = vunpack.c.l.b16 %v63
    %v80 = vunpack.c.l.b16 %v64
    %v81 = vunpack.c.l.b16 %v65
    %v82 = vunpack.c.l.b16 %v66
    %v83 = vpack.c.b16 %v76, %v75
    %v84 = vpack.c.b16 %v78, %v77
    %v85 = vpack.c.b16 %v80, %v79
    %v86 = vpack.c.b16 %v82, %v81
    %v92 = vsel %vm45, %v58, 0
    %94 = vmatprep.subr.bf16.mxu0 0
    %95 = vmatpush1.bf16.msra.mxu0 %v83
    %96 = vmatprep.subr.bf16.mxu0 0
    %97 = vmatpush1.bf16.msra.mxu0 %v84
    %98 = vmatprep.subr.bf16.mxu0 0
    %99 = vmatpush1.bf16.msra.mxu0 %v85
    %100 = vmatprep.subr.bf16.mxu0 0
    %101 = vmatpush1.bf16.msra.mxu0 %v86
    %102 = vmatprep.subr.bf16.mxu0 0
    %103 = vmatpush1.bf16.msra.mxu0 0
    %104 = vmatprep.subr.bf16.mxu0 0
    %105 = vmatpush1.bf16.msra.mxu0 0
    %106 = vmatprep.subr.bf16.mxu0 0
    %107 = vmatpush1.bf16.msra.mxu0 0
    %108 = vmatprep.subr.bf16.mxu0 0
    %109 = vmatpush1.bf16.msra.mxu0 0
    %110 = vmatprep.subr.bf16.mxu0 0
    %111 = vmatpush1.bf16.msra.mxu0 0
    %112 = vmatprep.subr.bf16.mxu0 0
    %113 = vmatpush1.bf16.msra.mxu0 0
    %114 = vmatprep.subr.bf16.mxu0 0
    %115 = vmatpush1.bf16.msra.mxu0 0
    %116 = vmatprep.subr.bf16.mxu0 0
    %117 = vmatpush1.bf16.msra.mxu0 0
    %118 = vmatprep.subr.bf16.mxu0 0
    %119 = vmatpush1.bf16.msra.mxu0 0
    %120 = vmatprep.subr.bf16.mxu0 0
    %121 = vmatpush1.bf16.msra.mxu0 0
    %122 = vmatprep.subr.bf16.mxu0 0
    %123 = vmatpush1.bf16.msra.mxu0 0
    %124 = vmatprep.subr.bf16.mxu0 0
    %125 = vmatpush1.bf16.msra.mxu0 0
    %126 = vmatprep.mubr.bf16.mxu0 0
    %127 = vmatmul.mubr.bf16.gmra.mrb[0].mxu0 %v92
    %v128 = vpop.f32.mrb[0].mxu0
    %v129 = vadd.f32 0.0, %v128
    %v130 = vpop.f32.mrb[0].mxu0
    %v131 = vpop.f32.mrb[0].mxu0
    %v132 = vadd.f32 0.0, %v131
    %v133 = vpop.f32.mrb[0].mxu0
    %134 = vdwg.mxu0
    %135 = vst [vmem:[#allocation7] sm:$0xff] %v129
    %136 = vst [vmem:[#allocation7 + $0x8] sm:$0xff] %v132
    // Predicated region
    $region18: #{tpu_custom_call.1} parent=1 // pred_check
      _
    $region19: #{tpu_custom_call.1} parent=1 // pred_check_branch
      %138 = sbr.rel (0) target = $region21
    $region20: #{tpu_custom_call.1} parent=1 // pred_region
      %s140 = ssub.s32 256, 256
      %141 = vsyncadd [#allocation4], %s140
      %s142 = sshll.u32 [#allocation7], 4
      %s143 = int_to_ptr.vmem [resolvable:$true] %s142
      %148 = dma.vmem_to_hbm [thread:$0]  %s143, 256, %s2, [#allocation4], 128, 128, 8
    $region21: #{tpu_custom_call.1} parent=1 // pred_fallthru
      _
    // Predicated region
    $region22: #{tpu_custom_call.1} parent=1 // pred_check
      _
    $region23: #{tpu_custom_call.1} parent=1 // pred_check_branch
      %150 = sbr.rel (0) target = $region25
    $region24: #{tpu_custom_call.1} parent=1 // pred_region
      %151 = dma.done [#allocation4], 256
    $region25: #{tpu_custom_call.1} parent=1 // pred_fallthru
      _
    %152 = vsyncpa [#allocation3], 1
    %153 = vsyncpa [#allocation6], 1
    %154 = vsyncpa [#allocation4], 1

</llo_original>
